<compile_context>
chip_gen: v7x
topology: tpu7x:2x2x1
jax: 0.10.0
libtpu: 0.0.40
codegen_flags: <defaults>
</compile_context>

<pallas_src>
import jax
import jax.numpy as jnp
from jax import lax
from jax.experimental import pallas as pl
from jax.experimental.pallas import tpu as pltpu

_STEP_BYTES_TARGET = 4 << 20   # aim for ~4 MiB of x+y HBM traffic per grid step
_MIN_STEP_BYTES = 1 << 20      # don't split below ~1 MiB/step just for parallelism
_LANE = 128


def outconv_kernel(x_ref, w_ref, b_ref, out_ref):
    """1x1 conv (channel mixing) on a lane-dense spatial slab.

    x_ref:   (NB, Cin, T)   NB images' spatial tiles (lanes = pixels)
    w_ref:   (Cout, Cin)
    b_ref:   (Cout, 1)
    out_ref: (NB, Cout, T)
    """
    w = w_ref[...]
    b = b_ref[...]
    nb = x_ref.shape[0]
    for i in range(nb):  # NB is small and static; one MXU matmul per image
        y = jnp.dot(w, x_ref[i], preferred_element_type=jnp.float32)
        out_ref[i] = (y + b).astype(out_ref.dtype)


def _round_down(x, m):
    return (x // m) * m


def _largest_divisor_leq(n, cap):
    cap = max(1, min(n, cap))
    for d in range(cap, 0, -1):
        if n % d == 0:
            return d
    return 1


def _plan_tiles(n, cin, cout, hw):
    """Pick (nb_images_per_step, spatial_tile, n_spatial_tiles).

    Per-step HBM traffic ~ nb * tile_hw * (cin + cout) * 4 bytes.
    """
    ch_bytes = (cin + cout) * 4
    img_bytes = hw * ch_bytes

    if img_bytes >= _STEP_BYTES_TARGET:
        # Large image: one image per step, tile the spatial axis (128-multiple,
        # ragged last block handled by cdiv tiling).
        nb = 1
        t = max(_LANE, _round_down(_STEP_BYTES_TARGET // ch_bytes, _LANE))
        if t >= hw:
            t = hw  # full extent is always a legal block shape
    else:
        # Small image: take the whole spatial extent, block several images
        # per step to keep bytes/step up.
        t = hw
        nb_max = max(1, _STEP_BYTES_TARGET // max(1, img_bytes))
        nb = _largest_divisor_leq(n, nb_max)

    def n_spatial(tile):
        return 1 if tile >= hw else pl.cdiv(hw, tile)

    # v7x has 2 TensorCores sharing the chip; keep >=4 parallel grid steps as
    # long as each step still moves >=1 MiB (otherwise splitting only adds
    # per-step overhead).
    for _ in range(16):
        if (n // nb) * n_spatial(t) >= 4:
            break
        if nb > 1 and (hw * ch_bytes * (nb // 2)) >= _MIN_STEP_BYTES:
            nb = _largest_divisor_leq(n, nb // 2)
            continue
        if t > _LANE and hw >= 2 * _LANE:
            t_half = max(_LANE, _round_down(t // 2, _LANE))
            if t_half < t and (t_half * ch_bytes * nb) >= _MIN_STEP_BYTES:
                t = t_half
                continue
        break

    return nb, t, n_spatial(t)


def outconv_forward(x, weight, bias):
    """x: (N, Cin, H, W) f32; weight: (Cout, Cin, 1, 1); bias: (Cout,).

    Returns (N, Cout, H, W), matching nn.Conv2d(Cin, Cout, kernel_size=1).
    """
    n, cin, h, w = x.shape
    cout = weight.shape[0]
    hw = h * w

    # Layout plumbing in the wrapper (free): lane-dense flattened spatial axis.
    x2 = x.reshape(n, cin, hw)
    w2 = weight.reshape(cout, cin)
    b2 = bias.reshape(cout, 1)

    nb, tile_hw, nt = _plan_tiles(n, cin, cout, hw)

    # Double-buffered x/out tiles + resident weight/bias, plus headroom.
    footprint = 2 * nb * (cin + cout) * tile_hw * 4 + 2 * (cout * cin + cout) * 4
    vmem_limit = min(48 << 20, max(32 << 20, footprint + (8 << 20)))

    cost = pl.CostEstimate(
        flops=2 * n * cout * cin * hw,
        transcendentals=0,
        bytes_accessed=4 * (n * cin * hw + n * cout * hw + cout * cin + cout),
    )

    out = pl.pallas_call(
        outconv_kernel,
        out_shape=jax.ShapeDtypeStruct((n, cout, hw), x.dtype),
        grid_spec=pltpu.PrefetchScalarGridSpec(
            num_scalar_prefetch=0,
            grid=(n // nb, nt),
            in_specs=[
                pl.BlockSpec((nb, cin, tile_hw), lambda i, j: (i, 0, j)),
                pl.BlockSpec((cout, cin), lambda i, j: (0, 0)),
                pl.BlockSpec((cout, 1), lambda i, j: (0, 0)),
            ],
            out_specs=pl.BlockSpec((nb, cout, tile_hw), lambda i, j: (i, 0, j)),
        ),
        compiler_params=pltpu.CompilerParams(
            dimension_semantics=("parallel", "parallel"),
            vmem_limit_bytes=vmem_limit,
        ),
        cost_estimate=cost,
    )(x2, w2, b2)

    return out.reshape(n, cout, h, w)


def outconv_reference(x, weight, bias):
    """Pure-JAX reference (matches PyTorch nn.Conv2d(k=1) semantics)."""
    y = lax.conv_general_dilated(
        x, weight, window_strides=(1, 1), padding='VALID',
        dimension_numbers=('NCHW', 'OIHW', 'NCHW'))
    return y + bias[None, :, None, None]


if __name__ == "__main__":
    key = jax.random.PRNGKey(0)
    kx, kw, kb = jax.random.split(key, 3)

    # small shapes: batch=2, in_channels=4, out_channels=2, spatial=16
    N, CIN, COUT, H, W = 2, 4, 2, 16, 16
    x = jax.random.normal(kx, (N, CIN, H, W), jnp.float32)
    weight = 0.1 * jax.random.normal(kw, (COUT, CIN, 1, 1), jnp.float32)
    bias = 0.1 * jax.random.normal(kb, (COUT,), jnp.float32)

    out = jax.block_until_ready(outconv_forward(x, weight, bias))

    ref = outconv_reference(x, weight, bias)
    assert out.shape == (N, COUT, H, W), out.shape
    max_err = float(jnp.max(jnp.abs(out - ref)))
    assert jnp.allclose(out, ref, atol=1e-4, rtol=1e-4), max_err

    print("KERNEL_OK")
</pallas_src>

<mosaic_0001>
module attributes {stable_mosaic.version = 11 : i64} {
  func.func @outconv_kernel(%arg0: i32, %arg1: i32, %arg2: memref<2x4x256xf32, #tpu.memory_space<vmem>>, %arg3: memref<2x4xf32, #tpu.memory_space<vmem>>, %arg4: memref<2x1xf32, #tpu.memory_space<vmem>>, %arg5: memref<2x2x256xf32, #tpu.memory_space<vmem>>) attributes {dimension_semantics = [#tpu.dimension_semantics<parallel>, #tpu.dimension_semantics<parallel>], iteration_bounds = array<i64: 1, 1>, scalar_prefetch = 0 : i64, scratch_operands = 0 : i64, tpu.core_type = #tpu.core_type<tc>, window_params = [{transform_indices = @transform_0, window_bounds = array<i64: 2, 4, 256>}, {pipeline_mode = #tpu.pipeline_mode<synchronous>, transform_indices = @transform_1, window_bounds = array<i64: 2, 4>}, {pipeline_mode = #tpu.pipeline_mode<synchronous>, transform_indices = @transform_2, window_bounds = array<i64: 2, 1>}, {transform_indices = @transform_3, window_bounds = array<i64: 2, 2, 256>}]} {
    %c0 = arith.constant 0 : index
    %c0_0 = arith.constant 0 : index
    %0 = vector.load %arg3[%c0, %c0_0] : memref<2x4xf32, #tpu.memory_space<vmem>>, vector<2x4xf32>
    %c0_1 = arith.constant 0 : index
    %c0_2 = arith.constant 0 : index
    %1 = vector.load %arg4[%c0_1, %c0_2] : memref<2x1xf32, #tpu.memory_space<vmem>>, vector<2x1xf32>
    %c0_3 = arith.constant 0 : index
    %c0_4 = arith.constant 0 : index
    %c0_5 = arith.constant 0 : index
    %2 = vector.load %arg2[%c0_3, %c0_4, %c0_5] : memref<2x4x256xf32, #tpu.memory_space<vmem>>, vector<1x4x256xf32>
    %3 = vector.shape_cast %2 : vector<1x4x256xf32> to vector<4x256xf32>
    %cst = arith.constant dense<0.000000e+00> : vector<2x256xf32>
    %4 = tpu.matmul %0, %3, %cst {dimension_numbers = #tpu.dot_dimension_numbers<[1], [0], [0], [1], [0, 0, 1, 1], [], []>} : vector<2x4xf32>, vector<4x256xf32>, vector<2x256xf32> -> vector<2x256xf32>
    %5 = vector.broadcast %1 : vector<2x1xf32> to vector<2x256xf32>
    %6 = arith.addf %4, %5 : vector<2x256xf32>
    %c0_6 = arith.constant 0 : index
    %c0_7 = arith.constant 0 : index
    %c0_8 = arith.constant 0 : index
    %7 = vector.load %arg5[%c0_6, %c0_7, %c0_8] : memref<2x2x256xf32, #tpu.memory_space<vmem>>, vector<1x2x256xf32>
    %8 = vector.shape_cast %7 : vector<1x2x256xf32> to vector<2x256xf32>
    %9 = vector.shape_cast %6 : vector<2x256xf32> to vector<1x2x256xf32>
    tpu.vector_store %arg5[%c0_6, %c0_7, %c0_8], %9 {strides = array<i32>} : memref<2x2x256xf32, #tpu.memory_space<vmem>>, vector<1x2x256xf32>,
    %c1 = arith.constant 1 : index
    %c0_9 = arith.constant 0 : index
    %c0_10 = arith.constant 0 : index
    %10 = vector.load %arg2[%c1, %c0_9, %c0_10] : memref<2x4x256xf32, #tpu.memory_space<vmem>>, vector<1x4x256xf32>
    %11 = vector.shape_cast %10 : vector<1x4x256xf32> to vector<4x256xf32>
    %cst_11 = arith.constant dense<0.000000e+00> : vector<2x256xf32>
    %12 = tpu.matmul %0, %11, %cst_11 {dimension_numbers = #tpu.dot_dimension_numbers<[1], [0], [0], [1], [0, 0, 1, 1], [], []>} : vector<2x4xf32>, vector<4x256xf32>, vector<2x256xf32> -> vector<2x256xf32>
    %13 = vector.broadcast %1 : vector<2x1xf32> to vector<2x256xf32>
    %14 = arith.addf %12, %13 : vector<2x256xf32>
    %c1_12 = arith.constant 1 : index
    %c0_13 = arith.constant 0 : index
    %c0_14 = arith.constant 0 : index
    %15 = vector.load %arg5[%c1_12, %c0_13, %c0_14] : memref<2x2x256xf32, #tpu.memory_space<vmem>>, vector<1x2x256xf32>
    %16 = vector.shape_cast %15 : vector<1x2x256xf32> to vector<2x256xf32>
    %17 = vector.shape_cast %14 : vector<2x256xf32> to vector<1x2x256xf32>
    tpu.vector_store %arg5[%c1_12, %c0_13, %c0_14], %17 {strides = array<i32>} : memref<2x2x256xf32, #tpu.memory_space<vmem>>, vector<1x2x256xf32>,
    return
  }
  func.func @transform_0(%arg0: i32, %arg1: i32) -> (i32, i32, i32) {
    %c0_i32 = arith.constant 0 : i32
    %c0_i32_0 = arith.constant 0 : i32
    return %arg0, %c0_i32, %arg1 : i32, i32, i32
  }
  func.func @transform_1(%arg0: i32, %arg1: i32) -> (i32, i32) {
    %c0_i32 = arith.constant 0 : i32
    %c0_i32_0 = arith.constant 0 : i32
    %c0_i32_1 = arith.constant 0 : i32
    return %c0_i32, %c0_i32_0 : i32, i32
  }
  func.func @transform_2(%arg0: i32, %arg1: i32) -> (i32, i32) {
    %c0_i32 = arith.constant 0 : i32
    %c0_i32_0 = arith.constant 0 : i32
    %c0_i32_1 = arith.constant 0 : i32
    return %c0_i32, %c0_i32_0 : i32, i32
  }
  func.func @transform_3(%arg0: i32, %arg1: i32) -> (i32, i32, i32) {
    %c0_i32 = arith.constant 0 : i32
    %c0_i32_0 = arith.constant 0 : i32
    return %arg0, %c0_i32, %arg1 : i32, i32, i32
  }
}

</mosaic_0001>

<llo_original>
// kernel: tpu_custom_call.1
$region0: #{tpu_custom_call.1}
  #allocation0 [shape = 'u32[]', space=smem, size = 0x4, offset = 0x4, fixed_abs, tag = 'smem constant byte address 0x4 - core index']
  #allocation1 [shape = 'u32[144,128]{1,0:T(1,128)}', space=vmem, size = 0x12000, scoped, tag = 'internal scratch']
  %s0 = inlined_call_operand.hbm [shape: f32[2,4,256], index: 0, kind: input, shape index: {}]
  %s1 = inlined_call_operand.vmem [shape: f32[2,4], index: 1, kind: input, shape index: {}]
  %s2 = inlined_call_operand.vmem [shape: f32[2,1], index: 2, kind: input, shape index: {}]
  %s3 = inlined_call_operand.hbm [shape: f32[2,2,256], index: 3, kind: output, shape index: {}]
  %s4 = sld [smem:[#allocation0]]
  $region26: #{tpu_custom_call.1} parent=0
    _
  %s6 = ssub.s32 1, %s4
  %s7 = scalar_select 0, %s6, %s4
  $region1: #{tpu_custom_call.1} parent=0
    #allocation2 [shape = 'u8[8192]{0}', space=vmem, size = 0x2000, scoped, tag = 'input window, operand 0, single buffered']
    #allocation3 [shape = 's32[1]{0}', space=sflag, size = 0x4, scoped, tag = 'scoped memory for tpu_custom_call.1']
    #allocation4 [shape = 's32[1]{0}', space=sflag, size = 0x4, scoped, tag = 'scoped memory for tpu_custom_call.1']
    #allocation5 [shape = 'u8[4096]{0}', space=vmem, size = 0x1000, scoped, tag = 'output window, operand 0, single buffered']
    %8 = vsyncpa [#allocation3], 0
    %9 = vsyncpa [#allocation4], 0
    // Predicated region
    $region2: #{tpu_custom_call.1} parent=1 // pred_check
      _
    $region3: #{tpu_custom_call.1} parent=1 // pred_check_branch
      %11 = sbr.rel (0) target = $region5
    $region4: #{tpu_custom_call.1} parent=1 // pred_region
      %s13 = ssub.s32 256, 256
      %14 = vsyncadd [#allocation3], %s13
      %s15 = sshll.u32 [#allocation2], 4
      %s16 = int_to_ptr.vmem [resolvable:$true] %s15
      %21 = dma.hbm_to_vmem [thread:$0]  %s0, 256, %s16, [#allocation3], 128, 128, 8
    $region5: #{tpu_custom_call.1} parent=1 // pred_fallthru
      _
    // Predicated region
    $region6: #{tpu_custom_call.1} parent=1 // pred_check
      _
    $region7: #{tpu_custom_call.1} parent=1 // pred_check_branch
      %23 = sbr.rel (0) target = $region9
    $region8: #{tpu_custom_call.1} parent=1 // pred_region
      _
    $region9: #{tpu_custom_call.1} parent=1 // pred_fallthru
      _
    // Predicated region
    $region10: #{tpu_custom_call.1} parent=1 // pred_check
      _
    $region11: #{tpu_custom_call.1} parent=1 // pred_check_branch
      %25 = sbr.rel (0) target = $region13
    $region12: #{tpu_custom_call.1} parent=1 // pred_region
      _
    $region13: #{tpu_custom_call.1} parent=1 // pred_fallthru
      _
    // Predicated region
    $region14: #{tpu_custom_call.1} parent=1 // pred_check
      _
    $region15: #{tpu_custom_call.1} parent=1 // pred_check_branch
      %27 = sbr.rel (0) target = $region17
    $region16: #{tpu_custom_call.1} parent=1 // pred_region
      %28 = dma.done [#allocation3], 256
    $region17: #{tpu_custom_call.1} parent=1 // pred_fallthru
      _
    %v29 = vld [vmem:[%s1] sm:$0x3]
    %v30 = vld [vmem:[%s2] sm:$0x3]
    %v31 = vld [vmem:[#allocation2] sm:$0xff]
    %33 = vset.pattern.permute.xlu0 0
    %34 = vperm.xlu0 %33, %v30
    %v35 = vpop.permute.xlu0 %34
    %v38 = vcombine.high %v31, %v31
    %vm39 = vcmask 31744
    %v41 = vsel %vm39, %v29, 0
    %vm43 = vcmask 1043456
    %v44 = vsel %vm43, %v31, 0
    %v46 = vsel %vm43, %v38, 0
    %48 = vmatprep.subr.mxu0 %v46
    %49 = vmatpush1.msra.mxu0 %v44
    %50 = vmatprep.subr.mxu0 0.0
    %51 = vmatpush1.msra.mxu0 0.0
    %52 = vmatprep.subr.mxu0 0.0
    %53 = vmatpush1.msra.mxu0 0.0
    %54 = vmatprep.subr.mxu0 0.0
    %55 = vmatpush1.msra.mxu0 0.0
    %56 = vmatprep.subr.mxu0 0.0
    %57 = vmatpush1.msra.mxu0 0.0
    %58 = vmatprep.subr.mxu0 0.0
    %59 = vmatpush1.msra.mxu0 0.0
    %60 = vmatprep.subr.mxu0 0.0
    %61 = vmatpush1.msra.mxu0 0.0
    %62 = vmatprep.subr.mxu0 0.0
    %63 = vmatpush1.msra.mxu0 0.0
    %64 = vmatprep.subr.mxu0 0.0
    %65 = vmatpush1.msra.mxu0 0.0
    %66 = vmatprep.subr.mxu0 0.0
    %67 = vmatpush1.msra.mxu0 0.0
    %68 = vmatprep.subr.mxu0 0.0
    %69 = vmatpush1.msra.mxu0 0.0
    %70 = vmatprep.subr.mxu0 0.0
    %71 = vmatpush1.msra.mxu0 0.0
    %72 = vmatprep.subr.mxu0 0.0
    %73 = vmatpush1.msra.mxu0 0.0
    %74 = vmatprep.subr.mxu0 0.0
    %75 = vmatpush1.msra.mxu0 0.0
    %76 = vmatprep.subr.mxu0 0.0
    %77 = vmatpush1.msra.mxu0 0.0
    %78 = vmatprep.subr.mxu0 0.0
    %79 = vmatpush1.msra.mxu0 0.0
    %80 = vmatprep.subr.mxu0 0.0
    %81 = vmatpush1.msra.mxu0 0.0
    %82 = vmatprep.subr.mxu0 0.0
    %83 = vmatpush1.msra.mxu0 0.0
    %84 = vmatprep.subr.mxu0 0.0
    %85 = vmatpush1.msra.mxu0 0.0
    %86 = vmatprep.subr.mxu0 0.0
    %87 = vmatpush1.msra.mxu0 0.0
    %88 = vmatprep.subr.mxu0 0.0
    %89 = vmatpush1.msra.mxu0 0.0
    %90 = vmatprep.subr.mxu0 0.0
    %91 = vmatpush1.msra.mxu0 0.0
    %92 = vmatprep.subr.mxu0 0.0
    %93 = vmatpush1.msra.mxu0 0.0
    %94 = vmatprep.subr.mxu0 0.0
    %95 = vmatpush1.msra.mxu0 0.0
    %96 = vmatprep.subr.mxu0 0.0
    %97 = vmatpush1.msra.mxu0 0.0
    %98 = vmatprep.subr.mxu0 0.0
    %99 = vmatpush1.msra.mxu0 0.0
    %100 = vmatprep.subr.mxu0 0.0
    %101 = vmatpush1.msra.mxu0 0.0
    %102 = vmatprep.subr.mxu0 0.0
    %103 = vmatpush1.msra.mxu0 0.0
    %104 = vmatprep.subr.mxu0 0.0
    %105 = vmatpush1.msra.mxu0 0.0
    %106 = vmatprep.subr.mxu0 0.0
    %107 = vmatpush1.msra.mxu0 0.0
    %108 = vmatprep.subr.mxu0 0.0
    %109 = vmatpush1.msra.mxu0 0.0
    %110 = vmatprep.subr.mxu0 0.0
    %111 = vmatpush1.msra.mxu0 0.0
    %112 = vmatprep.mubr.f32.mxu0 0.0
    %113 = vmatmul.mubr.f32.gmra.mrb[0].mxu0 %v41
    %v114 = vpop.f32.mrb[0].mxu0
    %v115 = vadd.f32 %v35, %v114
    %v116 = vpop.f32.mrb[0].mxu0
    %v117 = vadd.f32 %v35, %v116
    %118 = vdwg.mxu0
    %v121 = vcombine.low %v115, %v117
    %v123 = vunpack.c.l.s4 1983009808
    %v124 = vunpack.c.0.s8 %v123
    %v125 = vlaneseq
    %v126 = vshrl.u32 %v125, 7
    %v127 = vsub.s32 %v124, %v126
    %v128 = vrot.slane %v121, %v127
    %130 = vst [vmem:[#allocation5] sm:$0xf] %v128
    %s131 = scalar_lea.vmem [#allocation2], 8
    %v132 = vld [vmem:[%s131] sm:$0xff]
    %v134 = vcombine.high %v132, %v132
    %v135 = vsel %vm43, %v132, 0
    %v137 = vsel %vm43, %v134, 0
    %139 = vmatprep.subr.mxu0 %v137
    %140 = vmatpush1.msra.mxu0 %v135
    %141 = vmatprep.subr.mxu0 0.0
    %142 = vmatpush1.msra.mxu0 0.0
    %143 = vmatprep.subr.mxu0 0.0
    %144 = vmatpush1.msra.mxu0 0.0
    %145 = vmatprep.subr.mxu0 0.0
    %146 = vmatpush1.msra.mxu0 0.0
    %147 = vmatprep.subr.mxu0 0.0
    %148 = vmatpush1.msra.mxu0 0.0
    %149 = vmatprep.subr.mxu0 0.0
    %150 = vmatpush1.msra.mxu0 0.0
    %151 = vmatprep.subr.mxu0 0.0
    %152 = vmatpush1.msra.mxu0 0.0
    %153 = vmatprep.subr.mxu0 0.0
    %154 = vmatpush1.msra.mxu0 0.0
    %155 = vmatprep.subr.mxu0 0.0
    %156 = vmatpush1.msra.mxu0 0.0
    %157 = vmatprep.subr.mxu0 0.0
    %158 = vmatpush1.msra.mxu0 0.0
    %159 = vmatprep.subr.mxu0 0.0
    %160 = vmatpush1.msra.mxu0 0.0
    %161 = vmatprep.subr.mxu0 0.0
    %162 = vmatpush1.msra.mxu0 0.0
    %163 = vmatprep.subr.mxu0 0.0
    %164 = vmatpush1.msra.mxu0 0.0
    %165 = vmatprep.subr.mxu0 0.0
    %166 = vmatpush1.msra.mxu0 0.0
    %167 = vmatprep.subr.mxu0 0.0
    %168 = vmatpush1.msra.mxu0 0.0
    %169 = vmatprep.subr.mxu0 0.0
    %170 = vmatpush1.msra.mxu0 0.0
    %171 = vmatprep.subr.mxu0 0.0
    %172 = vmatpush1.msra.mxu0 0.0
    %173 = vmatprep.subr.mxu0 0.0
    %174 = vmatpush1.msra.mxu0 0.0
    %175 = vmatprep.subr.mxu0 0.0
    %176 = vmatpush1.msra.mxu0 0.0
    %177 = vmatprep.subr.mxu0 0.0
    %178 = vmatpush1.msra.mxu0 0.0
    %179 = vmatprep.subr.mxu0 0.0
    %180 = vmatpush1.msra.mxu0 0.0
    %181 = vmatprep.subr.mxu0 0.0
    %182 = vmatpush1.msra.mxu0 0.0
    %183 = vmatprep.subr.mxu0 0.0
    %184 = vmatpush1.msra.mxu0 0.0
    %185 = vmatprep.subr.mxu0 0.0
    %186 = vmatpush1.msra.mxu0 0.0
    %187 = vmatprep.subr.mxu0 0.0
    %188 = vmatpush1.msra.mxu0 0.0
    %189 = vmatprep.subr.mxu0 0.0
    %190 = vmatpush1.msra.mxu0 0.0
    %191 = vmatprep.subr.mxu0 0.0
    %192 = vmatpush1.msra.mxu0 0.0
    %193 = vmatprep.subr.mxu0 0.0
    %194 = vmatpush1.msra.mxu0 0.0
    %195 = vmatprep.subr.mxu0 0.0
    %196 = vmatpush1.msra.mxu0 0.0
    %197 = vmatprep.subr.mxu0 0.0
    %198 = vmatpush1.msra.mxu0 0.0
    %199 = vmatprep.subr.mxu0 0.0
    %200 = vmatpush1.msra.mxu0 0.0
    %201 = vmatprep.subr.mxu0 0.0
    %202 = vmatpush1.msra.mxu0 0.0
    %203 = vmatprep.mubr.f32.mxu0 0.0
    %204 = vmatmul.mubr.f32.gmra.mrb[0].mxu0 %v41
    %v205 = vpop.f32.mrb[0].mxu0
    %v206 = vadd.f32 %v35, %v205
    %v207 = vpop.f32.mrb[0].mxu0
    %v208 = vadd.f32 %v35, %v207
    %209 = vdwg.mxu0
    %v212 = vcombine.low %v206, %v208
    %v214 = vunpack.c.l.s4 1983009808
    %v215 = vunpack.c.0.s8 %v214
    %v216 = vlaneseq
    %v217 = vshrl.u32 %v216, 7
    %v218 = vsub.s32 %v215, %v217
    %v219 = vrot.slane %v212, %v218
    %s221 = scalar_lea.vmem [#allocation5], 4
    %222 = vst [vmem:[%s221] sm:$0xf] %v219
    // Predicated region
    $region18: #{tpu_custom_call.1} parent=1 // pred_check
      _
    $region19: #{tpu_custom_call.1} parent=1 // pred_check_branch
      %224 = sbr.rel (0) target = $region21
    $region20: #{tpu_custom_call.1} parent=1 // pred_region
      %s226 = ssub.s32 128, 128
      %227 = vsyncadd [#allocation4], %s226
      %s228 = sshll.u32 [#allocation5], 4
      %s229 = int_to_ptr.vmem [resolvable:$true] %s228
      %234 = dma.vmem_to_hbm [thread:$0]  %s229, 128, %s3, [#allocation4], 64, 64, 4
    $region21: #{tpu_custom_call.1} parent=1 // pred_fallthru
      _
    // Predicated region
    $region22: #{tpu_custom_call.1} parent=1 // pred_check
      _
    $region23: #{tpu_custom_call.1} parent=1 // pred_check_branch
      %236 = sbr.rel (0) target = $region25
    $region24: #{tpu_custom_call.1} parent=1 // pred_region
      %237 = dma.done [#allocation4], 128
    $region25: #{tpu_custom_call.1} parent=1 // pred_fallthru
      _
    %238 = vsyncpa [#allocation3], 1
    %239 = vsyncpa [#allocation4], 1

</llo_original>
